<compile_context>
chip_gen: v5e
topology: v5e:2x2
jax: 0.10.0
libtpu: 0.0.40
codegen_flags: <defaults>
</compile_context>

<pallas_src>
import numpy as np
import jax
import jax.numpy as jnp
from jax.experimental import pallas as pl
from jax.experimental.pallas import tpu as pltpu


# ----------------------------------------------------------------------------
# Interpolation-matrix construction (glue, plain numpy)
# ----------------------------------------------------------------------------
def _output_coords(scope_dim):
    """Matches torch.arange(omin + ostep/2, omax, ostep): integer element count computed
    explicitly (ceil of the double-precision ratio) to avoid FP off-by-one issues."""
    omin, omax, ostep = (float(v) for v in scope_dim)
    start = omin + ostep / 2.0
    n = int(np.ceil((omax - start) / ostep))
    return start + ostep * np.arange(n, dtype=np.float64)


def _normalize(v, input_scope_dim):
    imin, imax, _ = input_scope_dim
    return (v - imin) / (imax - imin) * 2.0 - 1.0


def _grid_sample_matrix(norm_coords, in_size):
    """Rows: output positions. Cols: input positions.
    Matches F.grid_sample(mode='bilinear', align_corners=False, padding_mode='zeros')."""
    ix = ((norm_coords + 1.0) * in_size - 1.0) / 2.0
    i0 = np.floor(ix)
    w1 = ix - i0
    w0 = 1.0 - w1
    i0 = i0.astype(np.int64)
    i1 = i0 + 1
    cols = np.arange(in_size)
    # out-of-range taps never match a column -> zero contribution (zeros padding)
    m = (cols[None, :] == i0[:, None]) * w0[:, None] + (cols[None, :] == i1[:, None]) * w1[:, None]
    return m.astype(np.float32)


def _prescale_matrix(in_size, scale):
    """Matches F.interpolate(mode='bilinear', align_corners=False) along one axis."""
    out_size = int(np.floor(in_size * scale))
    real = (np.arange(out_size, dtype=np.float64) + 0.5) / scale - 0.5
    real = np.maximum(real, 0.0)
    i0 = real.astype(np.int64)
    i1 = np.minimum(i0 + 1, in_size - 1)
    w1 = real - i0
    w0 = 1.0 - w1
    cols = np.arange(in_size)
    m = (cols[None, :] == i0[:, None]) * w0[:, None] + (cols[None, :] == i1[:, None]) * w1[:, None]
    return m.astype(np.float32), out_size


# ----------------------------------------------------------------------------
# Batch-tile sizing
# ----------------------------------------------------------------------------
def _choose_tb(B, H, W, Ho, Wo, *, budget_bytes=8 << 20, min_grid=2):
    """Images per grid step: big enough to amortize per-step pipeline overhead and feed
    the MXU large matmuls, small enough that the double-buffered in/out blocks plus the
    broadcast Wy and the f32 intermediate stay well inside every generation's default
    scoped VMEM (16 MiB on v5e, 32 MiB on v6e/v7x, of 128/128/64 MiB physical).  Keep at
    least `min_grid` grid steps when possible so v7x's two TensorCores both get work."""
    per_img = 4 * (2 * (H * W + Ho * Wo) + Ho * H + H * Wo)
    tb = max(1, min(B, budget_bytes // per_img))
    if B >= min_grid:
        tb = min(tb, max(1, B // min_grid))
    while B % tb:          # require TB | B so every block is full (no OOB blocks)
        tb -= 1
    return tb


# ----------------------------------------------------------------------------
# Pallas kernel: for a batch block of TB images, out[b] = Wy @ x[b] @ Wx^T
# ----------------------------------------------------------------------------
def _bev_resample_kernel(wy_ref, wxt_ref, x_ref, o_ref):
    tb, h, w = x_ref.shape
    ho = wy_ref.shape[0]
    wo = wxt_ref.shape[1]

    # (1) W-side contraction, flattened across the batch block: one big 2-D MXU matmul.
    if h % 8 == 0:
        t = jnp.dot(x_ref[...].reshape(tb * h, w), wxt_ref[...],
                    preferred_element_type=jnp.float32).reshape(tb, h, wo)
    else:
        # Sublane-unfriendly H: use the batched form instead of the flattening reshape.
        wxt_b = jnp.broadcast_to(wxt_ref[...], (tb, w, wo))
        t = jnp.einsum('bhw,bwo->bho', x_ref[...], wxt_b,
                       preferred_element_type=jnp.float32)

    # (2) H-side contraction: batched matmul (same dot_general pattern as the reference
    #     flash-attention kernel's 'bqk,bkd->bqd').
    wy_b = jnp.broadcast_to(wy_ref[...], (tb, ho, h))
    out = jnp.einsum('boh,bhw->bow', wy_b, t, preferred_element_type=jnp.float32)
    o_ref[...] = out.astype(o_ref.dtype)


def bev_grid_transform(x, *, input_scope, output_scope, prescale_factor=1):
    """x: (N, C, H_in, W_in) float32 (NCHW, same as the PyTorch module)."""
    N, C, H, W = x.shape

    # Host-side construction of the tiny separable interpolation matrices.
    Hs, Ws = H, W
    Py = np.eye(H, dtype=np.float32)
    Px = np.eye(W, dtype=np.float32)
    if prescale_factor != 1:
        # TODO(synk): prescale path (F.interpolate bilinear) is folded by matrix
        # composition but not exercised by the test below.
        Py, Hs = _prescale_matrix(H, prescale_factor)
        Px, Ws = _prescale_matrix(W, prescale_factor)

    cy = _normalize(_output_coords(output_scope[0]), input_scope[0])  # rows (H axis)
    cx = _normalize(_output_coords(output_scope[1]), input_scope[1])  # cols (W axis)
    Wy = _grid_sample_matrix(cy, Hs) @ Py          # (Ho, H_in)
    Wx = _grid_sample_matrix(cx, Ws) @ Px          # (Wo, W_in)
    Ho, Wo = Wy.shape[0], Wx.shape[0]

    Wy = jnp.asarray(Wy, dtype=jnp.float32)
    WxT = jnp.asarray(Wx.T, dtype=jnp.float32)     # (W_in, Wo)

    B = N * C
    xb = x.reshape(B, H, W)
    TB = _choose_tb(B, H, W, Ho, Wo)
    nb = B // TB

    flops = 2 * B * (H * W * Wo + Ho * H * Wo)
    bytes_accessed = 4 * (B * (H * W + Ho * Wo) + Ho * H + W * Wo)

    out = pl.pallas_call(
        _bev_resample_kernel,
        out_shape=jax.ShapeDtypeStruct((B, Ho, Wo), x.dtype),
        grid=(nb,),
        in_specs=[
            pl.BlockSpec((Ho, H), lambda b: (0, 0)),        # Wy   (resident, shared)
            pl.BlockSpec((W, Wo), lambda b: (0, 0)),        # Wx^T (resident, shared)
            pl.BlockSpec((TB, H, W), lambda b: (b, 0, 0)),  # batch block of x
        ],
        out_specs=pl.BlockSpec((TB, Ho, Wo), lambda b: (b, 0, 0)),
        compiler_params=pltpu.CompilerParams(dimension_semantics=("parallel",)),
        cost_estimate=pl.CostEstimate(flops=flops, transcendentals=0,
                                      bytes_accessed=bytes_accessed),
    )(Wy, WxT, xb)

    return out.reshape(N, C, Ho, Wo)


# ----------------------------------------------------------------------------
# Direct (gather-based) reference of F.grid_sample for verification
# ----------------------------------------------------------------------------
def _grid_sample_ref(x, grid):
    N, C, H, W = x.shape
    gx, gy = grid[..., 0], grid[..., 1]
    ix = ((gx + 1.0) * W - 1.0) / 2.0
    iy = ((gy + 1.0) * H - 1.0) / 2.0
    x0 = jnp.floor(ix).astype(jnp.int32); x1 = x0 + 1
    y0 = jnp.floor(iy).astype(jnp.int32); y1 = y0 + 1
    wx1 = ix - x0; wx0 = 1.0 - wx1
    wy1 = iy - y0; wy0 = 1.0 - wy1

    n_idx = jnp.arange(N)[:, None, None, None]
    c_idx = jnp.arange(C)[None, :, None, None]

    def gather(xi, yi):
        valid = ((xi >= 0) & (xi < W) & (yi >= 0) & (yi < H)).astype(x.dtype)
        xi_c = jnp.clip(xi, 0, W - 1)
        yi_c = jnp.clip(yi, 0, H - 1)
        v = x[n_idx, c_idx, yi_c[:, None, :, :], xi_c[:, None, :, :]]
        return v * valid[:, None, :, :]

    return (gather(x0, y0) * (wx0 * wy0)[:, None]
            + gather(x1, y0) * (wx1 * wy0)[:, None]
            + gather(x0, y1) * (wx0 * wy1)[:, None]
            + gather(x1, y1) * (wx1 * wy1)[:, None])


def _reference(x, *, input_scope, output_scope):
    # mirrors the PyTorch forward (prescale_factor == 1 path)
    cy = _normalize(_output_coords(output_scope[0]), input_scope[0])
    cx = _normalize(_output_coords(output_scope[1]), input_scope[1])
    u, v = np.meshgrid(cy, cx, indexing="ij")             # u along rows, v along cols
    grid = np.stack([v, u], axis=-1).astype(np.float32)   # (Ho, Wo, 2)
    grid = np.broadcast_to(grid, (x.shape[0],) + grid.shape)
    return _grid_sample_ref(x, jnp.asarray(grid))


# ----------------------------------------------------------------------------
if __name__ == "__main__":
    N, C, H, W = 2, 4, 16, 16
    input_scope = [(-8.0, 8.0, 1.0), (-8.0, 8.0, 1.0)]
    output_scope = [(-6.4, 6.4, 0.2), (-6.4, 6.4, 0.2)]   # -> 64 x 64 output grid

    key = jax.random.PRNGKey(0)
    x = jax.random.normal(key, (N, C, H, W), dtype=jnp.float32)

    out = bev_grid_transform(x, input_scope=input_scope, output_scope=output_scope,
                             prescale_factor=1)
    out = jax.block_until_ready(out)

    ref = jax.block_until_ready(_reference(x, input_scope=input_scope,
                                           output_scope=output_scope))

    assert out.shape == ref.shape, (out.shape, ref.shape)
    np.testing.assert_allclose(np.asarray(out), np.asarray(ref), rtol=1e-5, atol=1e-5)

    print("KERNEL_OK")
</pallas_src>

<mosaic_0001>
module attributes {stable_mosaic.version = 11 : i64} {
  func.func @_bev_resample_kernel(%arg0: i32, %arg1: memref<64x16xf32, #tpu.memory_space<vmem>>, %arg2: memref<16x64xf32, #tpu.memory_space<vmem>>, %arg3: memref<4x16x16xf32, #tpu.memory_space<vmem>>, %arg4: memref<4x64x64xf32, #tpu.memory_space<vmem>>) attributes {dimension_semantics = [#tpu.dimension_semantics<parallel>], iteration_bounds = array<i64: 2>, scalar_prefetch = 0 : i64, scratch_operands = 0 : i64, tpu.core_type = #tpu.core_type<tc>, window_params = [{pipeline_mode = #tpu.pipeline_mode<synchronous>, transform_indices = @transform_0, window_bounds = array<i64: 64, 16>}, {pipeline_mode = #tpu.pipeline_mode<synchronous>, transform_indices = @transform_1, window_bounds = array<i64: 16, 64>}, {transform_indices = @transform_2, window_bounds = array<i64: 4, 16, 16>}, {transform_indices = @transform_3, window_bounds = array<i64: 4, 64, 64>}]} {
    %c0 = arith.constant 0 : index
    %c0_0 = arith.constant 0 : index
    %c0_1 = arith.constant 0 : index
    %0 = vector.load %arg3[%c0, %c0_0, %c0_1] : memref<4x16x16xf32, #tpu.memory_space<vmem>>, vector<4x16x16xf32>
    %1 = vector.shape_cast %0 : vector<4x16x16xf32> to vector<64x16xf32>
    %c0_2 = arith.constant 0 : index
    %c0_3 = arith.constant 0 : index
    %2 = vector.load %arg2[%c0_2, %c0_3] : memref<16x64xf32, #tpu.memory_space<vmem>>, vector<16x64xf32>
    %cst = arith.constant dense<0.000000e+00> : vector<64x64xf32>
    %3 = tpu.matmul %1, %2, %cst {dimension_numbers = #tpu.dot_dimension_numbers<[1], [0], [0], [1], [0, 0, 1, 1], [], []>} : vector<64x16xf32>, vector<16x64xf32>, vector<64x64xf32> -> vector<64x64xf32>
    %4 = vector.shape_cast %3 : vector<64x64xf32> to vector<4x16x64xf32>
    %c0_4 = arith.constant 0 : index
    %c0_5 = arith.constant 0 : index
    %5 = vector.load %arg1[%c0_4, %c0_5] : memref<64x16xf32, #tpu.memory_space<vmem>>, vector<64x16xf32>
    %6 = vector.shape_cast %5 : vector<64x16xf32> to vector<1x64x16xf32>
    %7 = vector.broadcast %6 : vector<1x64x16xf32> to vector<4x64x16xf32>
    "tpu.trace_start"() <{level = 10 : i32, message = "boh,bhw->bow"}> : () -> ()
    %cst_6 = arith.constant dense<0.000000e+00> : vector<4x64x64xf32>
    %8 = tpu.matmul %7, %4, %cst_6 {dimension_numbers = #tpu.dot_dimension_numbers<[2], [1], [1], [2], [0, 0, 0, 1, 1, 2], [0], [0]>} : vector<4x64x16xf32>, vector<4x16x64xf32>, vector<4x64x64xf32> -> vector<4x64x64xf32>
    "tpu.trace_stop"() : () -> ()
    %c0_7 = arith.constant 0 : index
    %c0_8 = arith.constant 0 : index
    %c0_9 = arith.constant 0 : index
    %9 = vector.load %arg4[%c0_7, %c0_8, %c0_9] : memref<4x64x64xf32, #tpu.memory_space<vmem>>, vector<4x64x64xf32>
    tpu.vector_store %arg4[%c0_7, %c0_8, %c0_9], %8 {strides = array<i32>} : memref<4x64x64xf32, #tpu.memory_space<vmem>>, vector<4x64x64xf32>,
    return
  }
  func.func @transform_0(%arg0: i32) -> (i32, i32) {
    %c0_i32 = arith.constant 0 : i32
    %c0_i32_0 = arith.constant 0 : i32
    %c0_i32_1 = arith.constant 0 : i32
    return %c0_i32, %c0_i32_0 : i32, i32
  }
  func.func @transform_1(%arg0: i32) -> (i32, i32) {
    %c0_i32 = arith.constant 0 : i32
    %c0_i32_0 = arith.constant 0 : i32
    %c0_i32_1 = arith.constant 0 : i32
    return %c0_i32, %c0_i32_0 : i32, i32
  }
  func.func @transform_2(%arg0: i32) -> (i32, i32, i32) {
    %c0_i32 = arith.constant 0 : i32
    %c0_i32_0 = arith.constant 0 : i32
    %c0_i32_1 = arith.constant 0 : i32
    return %arg0, %c0_i32, %c0_i32_0 : i32, i32, i32
  }
  func.func @transform_3(%arg0: i32) -> (i32, i32, i32) {
    %c0_i32 = arith.constant 0 : i32
    %c0_i32_0 = arith.constant 0 : i32
    %c0_i32_1 = arith.constant 0 : i32
    return %arg0, %c0_i32, %c0_i32_0 : i32, i32, i32
  }
}

</mosaic_0001>

<llo_original>
// kernel: tpu_custom_call.1
$region0: #{tpu_custom_call.1}
  #allocation0 [shape = 'u32[]', space=smem, size = 0x4, offset = 0x4, fixed_abs, tag = 'smem constant byte address 0x4 - core index']
  #allocation1 [shape = 'u32[72,128]{1,0:T(1,128)}', space=vmem, size = 0x9000, scoped, tag = 'internal scratch']
  %s0 = inlined_call_operand.vmem [shape: f32[64,16], index: 0, kind: input, shape index: {}]
  %s1 = inlined_call_operand.vmem [shape: f32[16,64], index: 1, kind: input, shape index: {}]
  %s2 = inlined_call_operand.hbm [shape: f32[8,16,16], index: 2, kind: input, shape index: {}]
  %s3 = inlined_call_operand.hbm [shape: f32[8,64,64], index: 3, kind: output, shape index: {}]
  %s4 = sld [smem:[#allocation0]]
  $region49: #{tpu_custom_call.1} parent=0
    _
  %s6 = ssub.s32 1, %s4
  %s7 = scalar_select 0, %s6, %s4
  $region1: #{tpu_custom_call.1} parent=0
    #allocation2 [shape = 'u8[65536]{0}', space=vmem, size = 0x10000, scoped, tag = 'input window, operand 2']
    #allocation3 [shape = 's32[2]{0}', space=sflag, size = 0x8, scoped, tag = 'scoped memory for tpu_custom_call.1']
    #allocation4 [shape = 's32[2]{0}', space=sflag, size = 0x8, scoped, tag = 'scoped memory for tpu_custom_call.1']
    #allocation5 [shape = 'u8[262144]{0}', space=vmem, size = 0x40000, scoped, tag = 'output window, operand 0']
    %8 = vsyncpa [#allocation3], 0
    %s9 = scalar_lea.sflag [#allocation3], 1
    %10 = vsyncpa %s9, 0
    %11 = vsyncpa [#allocation4], 0
    %s12 = scalar_lea.sflag [#allocation4], 1
    %13 = vsyncpa %s12, 0
    loop: start=0, step=1, limit=4
    $region2: #{tpu_custom_call.1} parent=1 // loop_pre_header
      _
    $region3: #{tpu_custom_call.1} parent=1 // loop_header
      %s15 = sphi 0, %s19
      %p16 = scmp.ge.s32.totalorder %s15, 4
      %s23 = sphi 0, %s23
      %s25 = sphi 0, %s23
      %s26 = sphi 0, %s25
      %s40 = sphi 0, %s26
      %s44 = sphi 0, %s44
      %s46 = sphi 0, %s44
      %s47 = sphi 0, %s46
      %s61 = sphi 0, %s47
      %s67 = sphi 0, %s69
      %s70 = sphi 0, %s67
      %s71 = sphi 0, %s70
      %s87 = sphi 0, %s71
      %s93 = sphi 0, %s95
      %s96 = sphi 0, %s93
      %s97 = sphi 0, %s96
      %s113 = sphi 0, %s97
    $region4: #{tpu_custom_call.1} parent=1 // loop_header_branch
      %18 = sbr.rel (%p16) target = $region8
    $region5: #{tpu_custom_call.1} parent=1 // loop_body
      %s20 = ssub.s32 %s15, 1
      %s21 = ssub.s32 %s15, 2
      %s22 = sadd.s32 %s15, 1
      %s24 = sadd.s32 %s23, 1
      %p27 = scmp.eq.s32.totalorder %s15, 1
      %p28 = scmp.ne.s32.totalorder %s23, %s25
      %p29 = scmp.eq.s32.totalorder %s15, 0
      %p30 = por %p28, %p29
      %p31 = scmp.ne.s32.totalorder %s23, %s25
      %p32 = scmp.eq.s32.totalorder %s20, 1
      %p33 = por %p31, %p32
      %p34 = scmp.ne.s32.totalorder %s25, %s26
      %p35 = scmp.eq.s32.totalorder %s20, 0
      %p36 = por %p34, %p35
      %p37 = scmp.ne.s32.totalorder %s25, %s26
      %p38 = scmp.eq.s32.totalorder %s21, 1
      %p39 = por %p37, %p38
      %p41 = scmp.ne.s32.totalorder %s26, %s40
      %p42 = scmp.eq.s32.totalorder %s21, 0
      %p43 = por %p41, %p42
      %s45 = sadd.s32 %s44, 1
      %p48 = scmp.eq.s32.totalorder %s15, 1
      %p49 = scmp.ne.s32.totalorder %s44, %s46
      %p50 = scmp.eq.s32.totalorder %s15, 0
      %p51 = por %p49, %p50
      %p52 = scmp.ne.s32.totalorder %s44, %s46
      %p53 = scmp.eq.s32.totalorder %s20, 1
      %p54 = por %p52, %p53
      %p55 = scmp.ne.s32.totalorder %s46, %s47
      %p56 = scmp.eq.s32.totalorder %s20, 0
      %p57 = por %p55, %p56
      %p58 = scmp.ne.s32.totalorder %s46, %s47
      %p59 = scmp.eq.s32.totalorder %s21, 1
      %p60 = por %p58, %p59
      %p62 = scmp.ne.s32.totalorder %s47, %s61
      %p63 = scmp.eq.s32.totalorder %s21, 0
      %p64 = por %p62, %p63
      %s65 = ssub.s32 %s15, %s22
      %p66 = scmp.eq.s32.totalorder %s65, 0
      %s68 = sadd.s32 %s67, 1
      %s69 = scalar_select %p66, %s67, %s68
      %p72 = pneg %p66
      %p73 = scmp.eq.s32.totalorder %s15, 1
      %p74 = por %p72, %p73
      %p75 = scmp.ne.s32.totalorder %s67, %s70
      %p76 = scmp.eq.s32.totalorder %s15, 0
      %p77 = por %p75, %p76
      %p78 = scmp.ne.s32.totalorder %s67, %s70
      %p79 = scmp.eq.s32.totalorder %s20, 1
      %p80 = por %p78, %p79
      %p81 = scmp.ne.s32.totalorder %s70, %s71
      %p82 = scmp.eq.s32.totalorder %s20, 0
      %p83 = por %p81, %p82
      %p84 = scmp.ne.s32.totalorder %s70, %s71
      %p85 = scmp.eq.s32.totalorder %s21, 1
      %p86 = por %p84, %p85
      %p88 = scmp.ne.s32.totalorder %s71, %s87
      %p89 = scmp.eq.s32.totalorder %s21, 0
      %p90 = por %p88, %p89
      %s91 = ssub.s32 %s15, %s22
      %p92 = scmp.eq.s32.totalorder %s91, 0
      %s94 = sadd.s32 %s93, 1
      %s95 = scalar_select %p92, %s93, %s94
      %p98 = pneg %p92
      %p99 = scmp.eq.s32.totalorder %s15, 1
      %p100 = por %p98, %p99
      %p101 = scmp.ne.s32.totalorder %s93, %s96
      %p102 = scmp.eq.s32.totalorder %s15, 0
      %p103 = por %p101, %p102
      %p104 = scmp.ne.s32.totalorder %s93, %s96
      %p105 = scmp.eq.s32.totalorder %s20, 1
      %p106 = por %p104, %p105
      %p107 = scmp.ne.s32.totalorder %s96, %s97
      %p108 = scmp.eq.s32.totalorder %s20, 0
      %p109 = por %p107, %p108
      %p110 = scmp.ne.s32.totalorder %s96, %s97
      %p111 = scmp.eq.s32.totalorder %s21, 1
      %p112 = por %p110, %p111
      %p114 = scmp.ne.s32.totalorder %s97, %s113
      %p115 = scmp.eq.s32.totalorder %s21, 0
      %p116 = por %p114, %p115
      %p117 = scmp.le.s32.totalorder 1, %s15
      %p118 = scmp.lt.s32.totalorder %s15, 3
      %p119 = pnand %p117, %p118
      %p120 = pneg %p119
      // Predicated region
      $region9: #{tpu_custom_call.1} parent=5 // pred_check
        _
      $region10: #{tpu_custom_call.1} parent=5 // pred_check_branch
        %122 = sbr.rel (%p119) target = $region12
      $region11: #{tpu_custom_call.1} parent=5 // pred_region
        %s123 = ssub.s32 %s15, 1
        // Predicated region
        $region13: #{tpu_custom_call.1} parent=11 // pred_check
          %p124 = pneg %p36
        $region14: #{tpu_custom_call.1} parent=11 // pred_check_branch
          %126 = sbr.rel (%p124) target = $region16
        $region15: #{tpu_custom_call.1} parent=11 // pred_region
          _
        $region16: #{tpu_custom_call.1} parent=11 // pred_fallthru
          _
        // Predicated region
        $region17: #{tpu_custom_call.1} parent=11 // pred_check
          %p127 = pneg %p57
        $region18: #{tpu_custom_call.1} parent=11 // pred_check_branch
          %129 = sbr.rel (%p127) target = $region20
        $region19: #{tpu_custom_call.1} parent=11 // pred_region
          _
        $region20: #{tpu_custom_call.1} parent=11 // pred_fallthru
          _
      $region12: #{tpu_custom_call.1} parent=5 // pred_fallthru
        _
      %p130 = scmp.lt.s32.totalorder %s15, 2
      // Predicated region
      $region21: #{tpu_custom_call.1} parent=5 // pred_check
        %p131 = pneg %p130
      $region22: #{tpu_custom_call.1} parent=5 // pred_check_branch
        %133 = sbr.rel (%p131) target = $region24
      $region23: #{tpu_custom_call.1} parent=5 // pred_region
        // Predicated region
        $region25: #{tpu_custom_call.1} parent=23 // pred_check
          %p134 = pneg %p77
        $region26: #{tpu_custom_call.1} parent=23 // pred_check_branch
          %136 = sbr.rel (%p134) target = $region28
        $region27: #{tpu_custom_call.1} parent=23 // pred_region
          %s137 = sand.u32 %s67, 1
          %s138 = scalar_lea.sflag [#allocation3], %s137
          %s139 = sand.u32 %s67, 1
          %s140 = smul.addr %s139, 64
          %s141 = scalar_lea.vmem [#allocation2], %s140
          %s142 = smul.u32 4, %s15
          %144 = vsyncadd %s138, 0
          %s145 = smul.addr %s142, 2
          %s146 = smul.addr %s145, 8
          %s147 = scalar_lea.hbm %s2, %s146
          %s148 = sshll.u32 %s147, 4
          %s149 = int_to_ptr.hbm [resolvable:$true] %s148
          %s150 = sshll.u32 %s141, 4
          %s151 = int_to_ptr.vmem [resolvable:$true] %s150
          %156 = dma.hbm_to_vmem [thread:$0]  %s149, 1024, %s151, %s138, 128, 128, 8
        $region28: #{tpu_custom_call.1} parent=23 // pred_fallthru
          _
      $region24: #{tpu_custom_call.1} parent=5 // pred_fallthru
        _
      %p157 = scmp.le.s32.totalorder 1, %s15
      %p158 = scmp.lt.s32.totalorder %s15, 3
      %p159 = pnand %p157, %p158
      %p160 = pneg %p159
      // Predicated region
      $region29: #{tpu_custom_call.1} parent=5 // pred_check
        _
      $region30: #{tpu_custom_call.1} parent=5 // pred_check_branch
        %162 = sbr.rel (%p159) target = $region32
      $region31: #{tpu_custom_call.1} parent=5 // pred_region
        %s163 = ssub.s32 %s15, 1
        %s164 = sand.u32 %s70, 1
        %s165 = scalar_lea.sflag [#allocation3], %s164
        %s166 = sand.u32 %s70, 1
        %s167 = smul.addr %s166, 64
        %s168 = scalar_lea.vmem [#allocation2], %s167
        // Predicated region
        $region33: #{tpu_custom_call.1} parent=31 // pred_check
          %p169 = pneg %p83
        $region34: #{tpu_custom_call.1} parent=31 // pred_check_branch
          %171 = sbr.rel (%p169) target = $region36
        $region35: #{tpu_custom_call.1} parent=31 // pred_region
          %173 = dma.done %s165, 1024
        $region36: #{tpu_custom_call.1} parent=31 // pred_fallthru
          _
        %p174 = pneg %p36
        %p175 = pneg %p33
        %p176 = pneg %p57
        %p177 = pneg %p54
        %s178 = sand.u32 %s70, 1
        %s179 = scalar_lea.sflag [#allocation3], %s178
        %s180 = sand.u32 %s70, 1
        %s181 = smul.addr %s180, 64
        %s182 = scalar_lea.vmem [#allocation2], %s181
        %p183 = pneg %p83
        %p184 = pneg %p80
        %p185 = pneg %p109
        %p186 = pneg %p106
        %s187 = sand.u32 %s96, 1
        %s188 = scalar_lea.sflag [#allocation4], %s187
        %s189 = sand.u32 %s96, 1
        %s190 = smul.addr %s189, 256
        %s191 = scalar_lea.vmem [#allocation5], %s190
        %s192 = smul.u32 4, %s20
        %s193 = smul.u32 4, %s20
        %v194 = vld [vmem:[%s168] sm:$0xff]
        %v195 = vld [vmem:[%s168 + $0x8] sm:$0xff]
        %v196 = vld [vmem:[%s168 + $0x10] sm:$0xff]
        %v197 = vld [vmem:[%s168 + $0x18] sm:$0xff]
        %v198 = vld [vmem:[%s168 + $0x20] sm:$0xff]
        %v199 = vld [vmem:[%s168 + $0x28] sm:$0xff]
        %v200 = vld [vmem:[%s168 + $0x30] sm:$0xff]
        %v201 = vld [vmem:[%s168 + $0x38] sm:$0xff]
        %v202 = vld [vmem:[%s1] sm:$0xff]
        %v203 = vld [vmem:[%s1 + $0x8] sm:$0xff]
        %vm204 = vcmask 130048
        %v206 = vsel %vm204, %v194, 0
        %v209 = vsel %vm204, %v195, 0
        %v212 = vsel %vm204, %v196, 0
        %v215 = vsel %vm204, %v197, 0
        %v218 = vsel %vm204, %v198, 0
        %v221 = vsel %vm204, %v199, 0
        %v224 = vsel %vm204, %v200, 0
        %v227 = vsel %vm204, %v201, 0
        %229 = vmatpush.msra.mxu0 0.0
        %230 = vmatpush.msra.mxu0 0.0
        %231 = vmatpush.msra.mxu0 0.0
        %232 = vmatpush.msra.mxu0 0.0
        %233 = vmatpush.msra.mxu0 0.0
        %234 = vmatpush.msra.mxu0 0.0
        %235 = vmatpush.msra.mxu0 0.0
        %236 = vmatpush.msra.mxu0 0.0
        %237 = vmatpush.msra.mxu0 0.0
        %238 = vmatpush.msra.mxu0 0.0
        %239 = vmatpush.msra.mxu0 0.0
        %240 = vmatpush.msra.mxu0 0.0
        %241 = vmatpush.msra.mxu0 0.0
        %242 = vmatpush.msra.mxu0 0.0
        %243 = vmatpush.msra.mxu0 %v203
        %244 = vmatpush.msra.mxu0 %v202
        %245 = vmatmul.f32.gmra.mxu0 %v206
        %v246 = vpop.f32.mrf.mxu0
        %v247 = vadd.f32 0.0, %v246
        %248 = vmatmul.f32.gmra.mxu0 %v209
        %v249 = vpop.f32.mrf.mxu0
        %v250 = vadd.f32 0.0, %v249
        %251 = vmatmul.f32.gmra.mxu0 %v212
        %v252 = vpop.f32.mrf.mxu0
        %v253 = vadd.f32 0.0, %v252
        %254 = vmatmul.f32.gmra.mxu0 %v215
        %v255 = vpop.f32.mrf.mxu0
        %v256 = vadd.f32 0.0, %v255
        %257 = vmatmul.f32.gmra.mxu0 %v218
        %v258 = vpop.f32.mrf.mxu0
        %v259 = vadd.f32 0.0, %v258
        %260 = vmatmul.f32.gmra.mxu0 %v221
        %v261 = vpop.f32.mrf.mxu0
        %v262 = vadd.f32 0.0, %v261
        %263 = vmatmul.f32.gmra.mxu0 %v224
        %v264 = vpop.f32.mrf.mxu0
        %v265 = vadd.f32 0.0, %v264
        %266 = vmatmul.f32.gmra.mxu0 %v227
        %v267 = vpop.f32.mrf.mxu0
        %v268 = vadd.f32 0.0, %v267
        %269 = vdwg.mxu0
        %v270 = vld [vmem:[%s0] sm:$0xff]
        %v271 = vld [vmem:[%s0 + $0x8] sm:$0xff]
        %v272 = vld [vmem:[%s0 + $0x10] sm:$0xff]
        %v273 = vld [vmem:[%s0 + $0x18] sm:$0xff]
        %v274 = vld [vmem:[%s0 + $0x20] sm:$0xff]
        %v275 = vld [vmem:[%s0 + $0x28] sm:$0xff]
        %v276 = vld [vmem:[%s0 + $0x30] sm:$0xff]
        %v277 = vld [vmem:[%s0 + $0x38] sm:$0xff]
        %v279 = vsel %vm204, %v270, 0
        %v282 = vsel %vm204, %v271, 0
        %v285 = vsel %vm204, %v272, 0
        %v288 = vsel %vm204, %v273, 0
        %v291 = vsel %vm204, %v274, 0
        %v294 = vsel %vm204, %v275, 0
        %v297 = vsel %vm204, %v276, 0
        %v300 = vsel %vm204, %v277, 0
        %302 = vmatpush.msra.mxu0 0.0
        %303 = vmatpush.msra.mxu0 0.0
        %304 = vmatpush.msra.mxu0 0.0
        %305 = vmatpush.msra.mxu0 0.0
        %306 = vmatpush.msra.mxu0 0.0
        %307 = vmatpush.msra.mxu0 0.0
        %308 = vmatpush.msra.mxu0 0.0
        %309 = vmatpush.msra.mxu0 0.0
        %310 = vmatpush.msra.mxu0 0.0
        %311 = vmatpush.msra.mxu0 0.0
        %312 = vmatpush.msra.mxu0 0.0
        %313 = vmatpush.msra.mxu0 0.0
        %314 = vmatpush.msra.mxu0 0.0
        %315 = vmatpush.msra.mxu0 0.0
        %316 = vmatpush.msra.mxu0 %v250
        %317 = vmatpush.msra.mxu0 %v247
        %318 = vmatmul.f32.gmra.mxu0 %v279
        %v319 = vpop.f32.mrf.mxu0
        %v320 = vadd.f32 0.0, %v319
        %321 = vmatmul.f32.gmra.mxu0 %v282
        %v322 = vpop.f32.mrf.mxu0
        %v323 = vadd.f32 0.0, %v322
        %324 = vmatmul.f32.gmra.mxu0 %v285
        %v325 = vpop.f32.mrf.mxu0
        %v326 = vadd.f32 0.0, %v325
        %327 = vmatmul.f32.gmra.mxu0 %v288
        %v328 = vpop.f32.mrf.mxu0
        %v329 = vadd.f32 0.0, %v328
        %330 = vmatmul.f32.gmra.mxu0 %v291
        %v331 = vpop.f32.mrf.mxu0
        %v332 = vadd.f32 0.0, %v331
        %333 = vmatmul.f32.gmra.mxu0 %v294
        %v334 = vpop.f32.mrf.mxu0
        %v335 = vadd.f32 0.0, %v334
        %336 = vmatmul.f32.gmra.mxu0 %v297
        %v337 = vpop.f32.mrf.mxu0
        %v338 = vadd.f32 0.0, %v337
        %339 = vmatmul.f32.gmra.mxu0 %v300
        %v340 = vpop.f32.mrf.mxu0
        %v341 = vadd.f32 0.0, %v340
        %342 = vdwg.mxu0
        %343 = vmatpush.msra.mxu0 0.0
        %344 = vmatpush.msra.mxu0 0.0
        %345 = vmatpush.msra.mxu0 0.0
        %346 = vmatpush.msra.mxu0 0.0
        %347 = vmatpush.msra.mxu0 0.0
        %348 = vmatpush.msra.mxu0 0.0
        %349 = vmatpush.msra.mxu0 0.0
        %350 = vmatpush.msra.mxu0 0.0
        %351 = vmatpush.msra.mxu0 0.0
        %352 = vmatpush.msra.mxu0 0.0
        %353 = vmatpush.msra.mxu0 0.0
        %354 = vmatpush.msra.mxu0 0.0
        %355 = vmatpush.msra.mxu0 0.0
        %356 = vmatpush.msra.mxu0 0.0
        %357 = vmatpush.msra.mxu0 %v256
        %358 = vmatpush.msra.mxu0 %v253
        %359 = vmatmul.f32.gmra.mxu0 %v279
        %v360 = vpop.f32.mrf.mxu0
        %v361 = vadd.f32 0.0, %v360
        %362 = vmatmul.f32.gmra.mxu0 %v282
        %v363 = vpop.f32.mrf.mxu0
        %v364 = vadd.f32 0.0, %v363
        %365 = vmatmul.f32.gmra.mxu0 %v285
        %v366 = vpop.f32.mrf.mxu0
        %v367 = vadd.f32 0.0, %v366
        %368 = vmatmul.f32.gmra.mxu0 %v288
        %v369 = vpop.f32.mrf.mxu0
        %v370 = vadd.f32 0.0, %v369
        %371 = vmatmul.f32.gmra.mxu0 %v291
        %v372 = vpop.f32.mrf.mxu0
        %v373 = vadd.f32 0.0, %v372
        %374 = vmatmul.f32.gmra.mxu0 %v294
        %v375 = vpop.f32.mrf.mxu0
        %v376 = vadd.f32 0.0, %v375
        %377 = vmatmul.f32.gmra.mxu0 %v297
        %v378 = vpop.f32.mrf.mxu0
        %v379 = vadd.f32 0.0, %v378
        %380 = vmatmul.f32.gmra.mxu0 %v300
        %v381 = vpop.f32.mrf.mxu0
        %v382 = vadd.f32 0.0, %v381
        %383 = vdwg.mxu0
        %384 = vmatpush.msra.mxu0 0.0
        %385 = vmatpush.msra.mxu0 0.0
        %386 = vmatpush.msra.mxu0 0.0
        %387 = vmatpush.msra.mxu0 0.0
        %388 = vmatpush.msra.mxu0 0.0
        %389 = vmatpush.msra.mxu0 0.0
        %390 = vmatpush.msra.mxu0 0.0
        %391 = vmatpush.msra.mxu0 0.0
        %392 = vmatpush.msra.mxu0 0.0
        %393 = vmatpush.msra.mxu0 0.0
        %394 = vmatpush.msra.mxu0 0.0
        %395 = vmatpush.msra.mxu0 0.0
        %396 = vmatpush.msra.mxu0 0.0
        %397 = vmatpush.msra.mxu0 0.0
        %398 = vmatpush.msra.mxu0 %v262
        %399 = vmatpush.msra.mxu0 %v259
        %400 = vmatmul.f32.gmra.mxu0 %v279
        %v401 = vpop.f32.mrf.mxu0
        %v402 = vadd.f32 0.0, %v401
        %403 = vmatmul.f32.gmra.mxu0 %v282
        %v404 = vpop.f32.mrf.mxu0
        %v405 = vadd.f32 0.0, %v404
        %406 = vmatmul.f32.gmra.mxu0 %v285
        %v407 = vpop.f32.mrf.mxu0
        %v408 = vadd.f32 0.0, %v407
        %409 = vmatmul.f32.gmra.mxu0 %v288
        %v410 = vpop.f32.mrf.mxu0
        %v411 = vadd.f32 0.0, %v410
        %412 = vmatmul.f32.gmra.mxu0 %v291
        %v413 = vpop.f32.mrf.mxu0
        %v414 = vadd.f32 0.0, %v413
        %415 = vmatmul.f32.gmra.mxu0 %v294
        %v416 = vpop.f32.mrf.mxu0
        %v417 = vadd.f32 0.0, %v416
        %418 = vmatmul.f32.gmra.mxu0 %v297
        %v419 = vpop.f32.mrf.mxu0
        %v420 = vadd.f32 0.0, %v419
        %421 = vmatmul.f32.gmra.mxu0 %v300
        %v422 = vpop.f32.mrf.mxu0
        %v423 = vadd.f32 0.0, %v422
        %424 = vdwg.mxu0
        %425 = vmatpush.msra.mxu0 0.0
        %426 = vmatpush.msra.mxu0 0.0
        %427 = vmatpush.msra.mxu0 0.0
        %428 = vmatpush.msra.mxu0 0.0
        %429 = vmatpush.msra.mxu0 0.0
        %430 = vmatpush.msra.mxu0 0.0
        %431 = vmatpush.msra.mxu0 0.0
        %432 = vmatpush.msra.mxu0 0.0
        %433 = vmatpush.msra.mxu0 0.0
        %434 = vmatpush.msra.mxu0 0.0
        %435 = vmatpush.msra.mxu0 0.0
        %436 = vmatpush.msra.mxu0 0.0
        %437 = vmatpush.msra.mxu0 0.0
        %438 = vmatpush.msra.mxu0 0.0
        %439 = vmatpush.msra.mxu0 %v268
        %440 = vmatpush.msra.mxu0 %v265
        %441 = vmatmul.f32.gmra.mxu0 %v279
        %v442 = vpop.f32.mrf.mxu0
        %v443 = vadd.f32 0.0, %v442
        %444 = vmatmul.f32.gmra.mxu0 %v282
        %v445 = vpop.f32.mrf.mxu0
        %v446 = vadd.f32 0.0, %v445
        %447 = vmatmul.f32.gmra.mxu0 %v285
        %v448 = vpop.f32.mrf.mxu0
        %v449 = vadd.f32 0.0, %v448
        %450 = vmatmul.f32.gmra.mxu0 %v288
        %v451 = vpop.f32.mrf.mxu0
        %v452 = vadd.f32 0.0, %v451
        %453 = vmatmul.f32.gmra.mxu0 %v291
        %v454 = vpop.f32.mrf.mxu0
        %v455 = vadd.f32 0.0, %v454
        %456 = vmatmul.f32.gmra.mxu0 %v294
        %v457 = vpop.f32.mrf.mxu0
        %v458 = vadd.f32 0.0, %v457
        %459 = vmatmul.f32.gmra.mxu0 %v297
        %v460 = vpop.f32.mrf.mxu0
        %v461 = vadd.f32 0.0, %v460
        %462 = vmatmul.f32.gmra.mxu0 %v300
        %v463 = vpop.f32.mrf.mxu0
        %v464 = vadd.f32 0.0, %v463
        %465 = vdwg.mxu0
        %vm466 = vcmask 523264
        %467 = vst.msk [vmem:[%s191] sm:$0xff] %vm466, %v320
        %468 = vst.msk [vmem:[%s191 + $0x8] sm:$0xff] %vm466, %v323
        %469 = vst.msk [vmem:[%s191 + $0x10] sm:$0xff] %vm466, %v326
        %470 = vst.msk [vmem:[%s191 + $0x18] sm:$0xff] %vm466, %v329
        %471 = vst.msk [vmem:[%s191 + $0x20] sm:$0xff] %vm466, %v332
        %472 = vst.msk [vmem:[%s191 + $0x28] sm:$0xff] %vm466, %v335
        %473 = vst.msk [vmem:[%s191 + $0x30] sm:$0xff] %vm466, %v338
        %474 = vst.msk [vmem:[%s191 + $0x38] sm:$0xff] %vm466, %v341
        %475 = vst.msk [vmem:[%s191 + $0x40] sm:$0xff] %vm466, %v361
        %476 = vst.msk [vmem:[%s191 + $0x48] sm:$0xff] %vm466, %v364
        %477 = vst.msk [vmem:[%s191 + $0x50] sm:$0xff] %vm466, %v367
        %478 = vst.msk [vmem:[%s191 + $0x58] sm:$0xff] %vm466, %v370
        %479 = vst.msk [vmem:[%s191 + $0x60] sm:$0xff] %vm466, %v373
        %480 = vst.msk [vmem:[%s191 + $0x68] sm:$0xff] %vm466, %v376
        %481 = vst.msk [vmem:[%s191 + $0x70] sm:$0xff] %vm466, %v379
        %482 = vst.msk [vmem:[%s191 + $0x78] sm:$0xff] %vm466, %v382
        %483 = vst.msk [vmem:[%s191 + $0x80] sm:$0xff] %vm466, %v402
        %484 = vst.msk [vmem:[%s191 + $0x88] sm:$0xff] %vm466, %v405
        %485 = vst.msk [vmem:[%s191 + $0x90] sm:$0xff] %vm466, %v408
        %486 = vst.msk [vmem:[%s191 + $0x98] sm:$0xff] %vm466, %v411
        %487 = vst.msk [vmem:[%s191 + $0xa0] sm:$0xff] %vm466, %v414
        %488 = vst.msk [vmem:[%s191 + $0xa8] sm:$0xff] %vm466, %v417
        %489 = vst.msk [vmem:[%s191 + $0xb0] sm:$0xff] %vm466, %v420
        %490 = vst.msk [vmem:[%s191 + $0xb8] sm:$0xff] %vm466, %v423
        %491 = vst.msk [vmem:[%s191 + $0xc0] sm:$0xff] %vm466, %v443
        %492 = vst.msk [vmem:[%s191 + $0xc8] sm:$0xff] %vm466, %v446
        %493 = vst.msk [vmem:[%s191 + $0xd0] sm:$0xff] %vm466, %v449
        %494 = vst.msk [vmem:[%s191 + $0xd8] sm:$0xff] %vm466, %v452
        %495 = vst.msk [vmem:[%s191 + $0xe0] sm:$0xff] %vm466, %v455
        %496 = vst.msk [vmem:[%s191 + $0xe8] sm:$0xff] %vm466, %v458
        %497 = vst.msk [vmem:[%s191 + $0xf0] sm:$0xff] %vm466, %v461
        %498 = vst.msk [vmem:[%s191 + $0xf8] sm:$0xff] %vm466, %v464
        %s499 = sand.u32 %s96, 1
        %s500 = scalar_lea.sflag [#allocation4], %s499
        %s501 = sand.u32 %s96, 1
        %s502 = smul.addr %s501, 256
        %s503 = scalar_lea.vmem [#allocation5], %s502
        // Predicated region
        $region37: #{tpu_custom_call.1} parent=31 // pred_check
          %p504 = pneg %p106
        $region38: #{tpu_custom_call.1} parent=31 // pred_check_branch
          %506 = sbr.rel (%p504) target = $region40
        $region39: #{tpu_custom_call.1} parent=31 // pred_region
          %s507 = smul.u32 4, %s20
          %509 = vsyncadd %s500, 0
          %s510 = smul.addr %s507, 8
          %s511 = smul.addr %s510, 8
          %s512 = scalar_lea.hbm %s3, %s511
          %s513 = sshll.u32 %s503, 4
          %s514 = int_to_ptr.vmem [resolvable:$true] %s513
          %s515 = sshll.u32 %s512, 4
          %s516 = int_to_ptr.hbm [resolvable:$true] %s515
          %521 = dma.vmem_to_hbm [thread:$0]  %s514, 4096, %s516, %s500, 128, 128, 8
        $region40: #{tpu_custom_call.1} parent=31 // pred_fallthru
          _
      $region32: #{tpu_custom_call.1} parent=5 // pred_fallthru
        _
      %p522 = scmp.le.s32.totalorder 2, %s15
      // Predicated region
      $region41: #{tpu_custom_call.1} parent=5 // pred_check
        %p523 = pneg %p522
      $region42: #{tpu_custom_call.1} parent=5 // pred_check_branch
        %525 = sbr.rel (%p523) target = $region44
      $region43: #{tpu_custom_call.1} parent=5 // pred_region
        %s526 = ssub.s32 %s15, 2
        // Predicated region
        $region45: #{tpu_custom_call.1} parent=43 // pred_check
          %p527 = pneg %p112
        $region46: #{tpu_custom_call.1} parent=43 // pred_check_branch
          %529 = sbr.rel (%p527) target = $region48
        $region47: #{tpu_custom_call.1} parent=43 // pred_region
          %s530 = sand.u32 %s97, 1
          %s531 = scalar_lea.sflag [#allocation4], %s530
          %s532 = sand.u32 %s97, 1
          %s533 = smul.addr %s532, 256
          %s534 = scalar_lea.vmem [#allocation5], %s533
          %536 = dma.done %s531, 4096
        $region48: #{tpu_custom_call.1} parent=43 // pred_fallthru
          _
      $region44: #{tpu_custom_call.1} parent=5 // pred_fallthru
        _
    $region6: #{tpu_custom_call.1} parent=1 // loop_footer
      %s19 = sadd.s32 1, %s15
    $region7: #{tpu_custom_call.1} parent=1 // loop_footer_branch
      %14 = sbr.rel target = $region3
    $region8: #{tpu_custom_call.1} parent=1 // loop_exit
      _
    %537 = vsyncpa [#allocation3], 1
    %s538 = scalar_lea.sflag [#allocation3], 1
    %539 = vsyncpa %s538, 1
    %540 = vsyncpa [#allocation4], 1
    %s541 = scalar_lea.sflag [#allocation4], 1
    %542 = vsyncpa %s541, 1

</llo_original>
